<compile_context>
chip_gen: v6e
topology: v6e:2x2x1
jax: 0.10.0
libtpu: 0.0.40
codegen_flags: <defaults>
</compile_context>

<pallas_src>
import functools

import jax
import jax.numpy as jnp
from jax.experimental import pallas as pl
from jax.experimental.pallas import tpu as pltpu


def _elu(x):
    # ELU, alpha=1.0 (PyTorch default).  exp(min(x,0)) - 1 (instead of expm1)
    # keeps the lowering to the plain EUP exp op; the clamp prevents the
    # not-taken branch from overflowing.
    return jnp.where(x > 0, x, jnp.exp(jnp.minimum(x, 0.0)) - 1.0)


def _sigmoid(x):
    # Numerically stable, exact sigmoid: one EUP exp + one f32 divide.
    z = jnp.exp(-jnp.abs(x))
    return jnp.where(x >= 0, 1.0, z) / (1.0 + z)


def mlp_kernel(x_ref, w1_ref, b1_ref, w2_ref, b2_ref, w3_ref, b3_ref, o_ref,
               *, chunk):
    w1 = w1_ref[...]          # (16, 2)
    b1 = b1_ref[...]          # (16, 1)
    w2 = w2_ref[...]          # (16, 16)
    b2 = b2_ref[...]          # (16, 1)
    w3 = w3_ref[...]          # (16, 1)   column layout for the final layer
    b3 = b3_ref[...]          # (1, 1)

    tb = x_ref.shape[1]       # static; guaranteed tb % chunk == 0, <=16 chunks

    # Statically unrolled sub-tiling: decouples the (large) DMA tile from the
    # compute working set -- live activations are (16, chunk), not (16, tb).
    for off in range(0, tb, chunk):
        x = x_ref[:, pl.ds(off, chunk)]                        # (2, chunk)

        # Layer 1: K=2 -> two broadcast FMAs on the VPU (skip the MXU).
        h1 = _elu(w1[:, 0:1] * x[0:1, :] + w1[:, 1:2] * x[1:2, :] + b1)

        # Layer 2: 16x16 contraction on the MXU, N=chunk is lane-dense.
        h2 = _elu(jnp.dot(w2, h1, preferred_element_type=jnp.float32) + b2)

        # Layer 3: single output row -> VPU multiply + sublane reduce.
        h3 = jnp.sum(w3 * h2, axis=0, keepdims=True) + b3      # (1, chunk)

        o_ref[:, pl.ds(off, chunk)] = _sigmoid(h3)


def model_a_forward(x, params, *, tb=32768):
    """x: (B, 2) float32 -> (B, 1) float32 (ModelA forward)."""
    w1, b1, w2, b2, w3, b3 = params
    B = x.shape[0]
    lane = 128

    tb_max = max(lane, (int(tb) // lane) * lane)    # requested tile, mult of 128
    Bp128 = pl.cdiv(B, lane) * lane                 # minimal lane-padded batch

    # Grid-step count: cover the batch with tiles <= tb_max; use >=2 steps when
    # the batch spans >=2 lane tiles so the "parallel" axis can shard across
    # both v7x TensorCores.
    n = pl.cdiv(Bp128, min(tb_max, Bp128))
    if Bp128 >= 2 * lane:
        n = max(n, 2)

    # Balanced tile size (multiple of 128; snapped to 2048 when big so the
    # in-kernel sub-chunk stays at 2048 lanes).
    q = 2048 if (tb_max % 2048 == 0 and pl.cdiv(Bp128, n) >= 2048) else lane
    tb = pl.cdiv(pl.cdiv(Bp128, n), q) * q
    Bp = n * tb

    # In-kernel compute sub-chunk: smallest 128-multiple divisor of tb that
    # keeps the (statically unrolled) chunk count <= 16.
    m = tb // lane
    d = m
    for cand in range(1, m + 1):
        if m % cand == 0 and (m // cand) <= 16:
            d = cand
            break
    chunk = lane * d

    # Single fused relayout + pad: (B, 2) -> (2, Bp); kernel is batch-on-lanes.
    xT = jnp.pad(x.astype(jnp.float32).T, ((0, 0), (0, Bp - B)))

    resident = lambda i: (0, 0)   # weights/biases: constant block -> stay in VMEM

    out = pl.pallas_call(
        functools.partial(mlp_kernel, chunk=chunk),
        out_shape=jax.ShapeDtypeStruct((1, Bp), jnp.float32),
        grid=(n,),
        in_specs=[
            pl.BlockSpec((2, tb), lambda i: (0, i)),   # x stream (pipelined)
            pl.BlockSpec((16, 2), resident),           # w1
            pl.BlockSpec((16, 1), resident),           # b1
            pl.BlockSpec((16, 16), resident),          # w2
            pl.BlockSpec((16, 1), resident),           # b2
            pl.BlockSpec((16, 1), resident),           # w3 (column)
            pl.BlockSpec((1, 1), resident),            # b3
        ],
        out_specs=pl.BlockSpec((1, tb), lambda i: (0, i)),
        compiler_params=pltpu.CompilerParams(
            dimension_semantics=("parallel",)),
    )(xT, w1, b1, w2, b2, w3, b3)

    return out[:, :B].T        # (B, 1)


def init_params(key):
    # Deterministic init mimicking torch.nn.Linear default (uniform +-1/sqrt(in)).
    def linear(k, fan_in, fan_out):
        kw, kb = jax.random.split(k)
        bound = 1.0 / (fan_in ** 0.5)
        w = jax.random.uniform(kw, (fan_out, fan_in), jnp.float32, -bound, bound)
        b = jax.random.uniform(kb, (fan_out, 1), jnp.float32, -bound, bound)
        return w, b

    k1, k2, k3 = jax.random.split(key, 3)
    w1, b1 = linear(k1, 2, 16)      # (16, 2), (16, 1)
    w2, b2 = linear(k2, 16, 16)     # (16, 16), (16, 1)
    w3r, b3 = linear(k3, 16, 1)     # (1, 16), (1, 1)
    w3 = w3r.T                      # store last layer as a column (16, 1)
    return (w1, b1, w2, b2, w3, b3)


def reference_forward(x, params):
    w1, b1, w2, b2, w3, b3 = params
    with jax.default_matmul_precision("highest"):
        h = jax.nn.elu(x @ w1.T + b1.T)
        h = jax.nn.elu(h @ w2.T + b2.T)
        return jax.nn.sigmoid(h @ w3 + b3.T)


if __name__ == "__main__":
    key = jax.random.PRNGKey(0)
    kx, kx2, kp = jax.random.split(key, 3)
    params = init_params(kp)

    # Primary check: small batch of (B, 2) rows, single grid step.
    batch = 8
    x = jax.random.normal(kx, (batch, 2), dtype=jnp.float32)
    out = jax.block_until_ready(model_a_forward(x, params))
    ref = reference_forward(x, params)
    assert out.shape == (batch, 1)
    assert jnp.allclose(out, ref, atol=1e-4, rtol=1e-4), "mismatch vs reference (B=8)"

    # Multiple grid steps + batch padding with a forced small tile.
    batch2 = 300
    x2 = jax.random.normal(kx2, (batch2, 2), dtype=jnp.float32)
    out2 = jax.block_until_ready(model_a_forward(x2, params, tb=128))
    ref2 = reference_forward(x2, params)
    assert out2.shape == (batch2, 1)
    assert jnp.allclose(out2, ref2, atol=1e-4, rtol=1e-4), "mismatch vs reference (B=300, tb=128)"

    # Default large-tile path (tile auto-clamped/balanced, 2 grid steps).
    out3 = jax.block_until_ready(model_a_forward(x2, params))
    assert out3.shape == (batch2, 1)
    assert jnp.allclose(out3, ref2, atol=1e-4, rtol=1e-4), "mismatch vs reference (B=300, default tb)"

    print("KERNEL_OK")
</pallas_src>

<mosaic_0001>
module attributes {stable_mosaic.version = 11 : i64} {
  func.func @mlp_kernel(%arg0: i32, %arg1: memref<2x128xf32, #tpu.memory_space<vmem>>, %arg2: memref<16x2xf32, #tpu.memory_space<vmem>>, %arg3: memref<16x1xf32, #tpu.memory_space<vmem>>, %arg4: memref<16x16xf32, #tpu.memory_space<vmem>>, %arg5: memref<16x1xf32, #tpu.memory_space<vmem>>, %arg6: memref<16x1xf32, #tpu.memory_space<vmem>>, %arg7: memref<1x1xf32, #tpu.memory_space<vmem>>, %arg8: memref<1x128xf32, #tpu.memory_space<vmem>>) attributes {dimension_semantics = [#tpu.dimension_semantics<parallel>], iteration_bounds = array<i64: 1>, scalar_prefetch = 0 : i64, scratch_operands = 0 : i64, tpu.core_type = #tpu.core_type<tc>, window_params = [{transform_indices = @transform_0, window_bounds = array<i64: 2, 128>}, {pipeline_mode = #tpu.pipeline_mode<synchronous>, transform_indices = @transform_1, window_bounds = array<i64: 16, 2>}, {pipeline_mode = #tpu.pipeline_mode<synchronous>, transform_indices = @transform_2, window_bounds = array<i64: 16, 1>}, {pipeline_mode = #tpu.pipeline_mode<synchronous>, transform_indices = @transform_3, window_bounds = array<i64: 16, 16>}, {pipeline_mode = #tpu.pipeline_mode<synchronous>, transform_indices = @transform_4, window_bounds = array<i64: 16, 1>}, {pipeline_mode = #tpu.pipeline_mode<synchronous>, transform_indices = @transform_5, window_bounds = array<i64: 16, 1>}, {pipeline_mode = #tpu.pipeline_mode<synchronous>, transform_indices = @transform_6, window_bounds = array<i64: 1, 1>}, {transform_indices = @transform_7, window_bounds = array<i64: 1, 128>}]} {
    %c0 = arith.constant 0 : index
    %c0_0 = arith.constant 0 : index
    %0 = vector.load %arg2[%c0, %c0_0] : memref<16x2xf32, #tpu.memory_space<vmem>>, vector<16x2xf32>
    %c0_1 = arith.constant 0 : index
    %c0_2 = arith.constant 0 : index
    %1 = vector.load %arg3[%c0_1, %c0_2] : memref<16x1xf32, #tpu.memory_space<vmem>>, vector<16x1xf32>
    %c0_3 = arith.constant 0 : index
    %c0_4 = arith.constant 0 : index
    %2 = vector.load %arg4[%c0_3, %c0_4] : memref<16x16xf32, #tpu.memory_space<vmem>>, vector<16x16xf32>
    %c0_5 = arith.constant 0 : index
    %c0_6 = arith.constant 0 : index
    %3 = vector.load %arg5[%c0_5, %c0_6] : memref<16x1xf32, #tpu.memory_space<vmem>>, vector<16x1xf32>
    %c0_7 = arith.constant 0 : index
    %c0_8 = arith.constant 0 : index
    %4 = vector.load %arg6[%c0_7, %c0_8] : memref<16x1xf32, #tpu.memory_space<vmem>>, vector<16x1xf32>
    %c0_9 = arith.constant 0 : index
    %c0_10 = arith.constant 0 : index
    %5 = vector.load %arg7[%c0_9, %c0_10] : memref<1x1xf32, #tpu.memory_space<vmem>>, vector<1x1xf32>
    %c0_11 = arith.constant 0 : index
    %c0_12 = arith.constant 0 : index
    %6 = vector.load %arg1[%c0_11, %c0_12] : memref<2x128xf32, #tpu.memory_space<vmem>>, vector<2x128xf32>
    %7 = vector.extract_strided_slice %0 {offsets = [0, 0], sizes = [16, 1], strides = [1, 1]} : vector<16x2xf32> to vector<16x1xf32>
    %8 = vector.extract_strided_slice %6 {offsets = [0, 0], sizes = [1, 128], strides = [1, 1]} : vector<2x128xf32> to vector<1x128xf32>
    %9 = vector.broadcast %7 : vector<16x1xf32> to vector<16x128xf32>
    %10 = vector.broadcast %8 : vector<1x128xf32> to vector<16x128xf32>
    %11 = arith.mulf %9, %10 : vector<16x128xf32>
    %12 = vector.extract_strided_slice %0 {offsets = [0, 1], sizes = [16, 1], strides = [1, 1]} : vector<16x2xf32> to vector<16x1xf32>
    %13 = vector.extract_strided_slice %6 {offsets = [1, 0], sizes = [1, 128], strides = [1, 1]} : vector<2x128xf32> to vector<1x128xf32>
    %14 = vector.broadcast %12 : vector<16x1xf32> to vector<16x128xf32>
    %15 = vector.broadcast %13 : vector<1x128xf32> to vector<16x128xf32>
    %16 = arith.mulf %14, %15 : vector<16x128xf32>
    %17 = arith.addf %11, %16 : vector<16x128xf32>
    %18 = vector.broadcast %1 : vector<16x1xf32> to vector<16x128xf32>
    %19 = arith.addf %17, %18 : vector<16x128xf32>
    %cst = arith.constant 0.000000e+00 : f32
    %20 = vector.broadcast %cst : f32 to vector<16x128xf32>
    %21 = arith.cmpf ogt, %19, %20 : vector<16x128xf32>
    %cst_13 = arith.constant 0.000000e+00 : f32
    %22 = vector.broadcast %cst_13 : f32 to vector<16x128xf32>
    %23 = arith.minimumf %19, %22 : vector<16x128xf32>
    %24 = math.exp %23 : vector<16x128xf32>
    %cst_14 = arith.constant 1.000000e+00 : f32
    %25 = vector.broadcast %cst_14 : f32 to vector<16x128xf32>
    %26 = arith.subf %24, %25 : vector<16x128xf32>
    %27 = arith.select %21, %19, %26 : vector<16x128xi1>, vector<16x128xf32>
    %cst_15 = arith.constant dense<0.000000e+00> : vector<16x128xf32>
    %28 = tpu.matmul %2, %27, %cst_15 {dimension_numbers = #tpu.dot_dimension_numbers<[1], [0], [0], [1], [0, 0, 1, 1], [], []>} : vector<16x16xf32>, vector<16x128xf32>, vector<16x128xf32> -> vector<16x128xf32>
    %29 = vector.broadcast %3 : vector<16x1xf32> to vector<16x128xf32>
    %30 = arith.addf %28, %29 : vector<16x128xf32>
    %cst_16 = arith.constant 0.000000e+00 : f32
    %31 = vector.broadcast %cst_16 : f32 to vector<16x128xf32>
    %32 = arith.cmpf ogt, %30, %31 : vector<16x128xf32>
    %cst_17 = arith.constant 0.000000e+00 : f32
    %33 = vector.broadcast %cst_17 : f32 to vector<16x128xf32>
    %34 = arith.minimumf %30, %33 : vector<16x128xf32>
    %35 = math.exp %34 : vector<16x128xf32>
    %cst_18 = arith.constant 1.000000e+00 : f32
    %36 = vector.broadcast %cst_18 : f32 to vector<16x128xf32>
    %37 = arith.subf %35, %36 : vector<16x128xf32>
    %38 = arith.select %32, %30, %37 : vector<16x128xi1>, vector<16x128xf32>
    %39 = vector.broadcast %4 : vector<16x1xf32> to vector<16x128xf32>
    %40 = arith.mulf %39, %38 : vector<16x128xf32>
    %cst_19 = arith.constant dense<0.000000e+00> : vector<128xf32>
    %41 = vector.multi_reduction <add>, %40, %cst_19 [0] : vector<16x128xf32> to vector<128xf32>
    %42 = vector.shape_cast %41 : vector<128xf32> to vector<1x128xf32>
    %43 = vector.broadcast %5 : vector<1x1xf32> to vector<1x128xf32>
    %44 = arith.addf %42, %43 : vector<1x128xf32>
    %45 = math.absf %44 : vector<1x128xf32>
    %cst_20 = arith.constant 0.000000e+00 : f32
    %46 = vector.broadcast %cst_20 : f32 to vector<1x128xf32>
    %47 = arith.subf %46, %45 : vector<1x128xf32>
    %48 = math.exp %47 : vector<1x128xf32>
    %cst_21 = arith.constant 0.000000e+00 : f32
    %49 = vector.broadcast %cst_21 : f32 to vector<1x128xf32>
    %50 = arith.cmpf oge, %44, %49 : vector<1x128xf32>
    %cst_22 = arith.constant 1.000000e+00 : f32
    %51 = vector.broadcast %cst_22 : f32 to vector<1x128xf32>
    %52 = arith.select %50, %51, %48 : vector<1x128xi1>, vector<1x128xf32>
    %cst_23 = arith.constant 1.000000e+00 : f32
    %53 = vector.broadcast %cst_23 : f32 to vector<1x128xf32>
    %54 = arith.addf %53, %48 : vector<1x128xf32>
    %55 = arith.divf %52, %54 : vector<1x128xf32>
    %c0_24 = arith.constant 0 : index
    %c0_25 = arith.constant 0 : index
    %56 = vector.load %arg8[%c0_24, %c0_25] : memref<1x128xf32, #tpu.memory_space<vmem>>, vector<1x128xf32>
    tpu.vector_store %arg8[%c0_24, %c0_25], %55 {strides = array<i32>} : memref<1x128xf32, #tpu.memory_space<vmem>>, vector<1x128xf32>,
    return
  }
  func.func @transform_0(%arg0: i32) -> (i32, i32) {
    %c0_i32 = arith.constant 0 : i32
    %c0_i32_0 = arith.constant 0 : i32
    return %c0_i32, %arg0 : i32, i32
  }
  func.func @transform_1(%arg0: i32) -> (i32, i32) {
    %c0_i32 = arith.constant 0 : i32
    %c0_i32_0 = arith.constant 0 : i32
    %c0_i32_1 = arith.constant 0 : i32
    return %c0_i32, %c0_i32_0 : i32, i32
  }
  func.func @transform_2(%arg0: i32) -> (i32, i32) {
    %c0_i32 = arith.constant 0 : i32
    %c0_i32_0 = arith.constant 0 : i32
    %c0_i32_1 = arith.constant 0 : i32
    return %c0_i32, %c0_i32_0 : i32, i32
  }
  func.func @transform_3(%arg0: i32) -> (i32, i32) {
    %c0_i32 = arith.constant 0 : i32
    %c0_i32_0 = arith.constant 0 : i32
    %c0_i32_1 = arith.constant 0 : i32
    return %c0_i32, %c0_i32_0 : i32, i32
  }
  func.func @transform_4(%arg0: i32) -> (i32, i32) {
    %c0_i32 = arith.constant 0 : i32
    %c0_i32_0 = arith.constant 0 : i32
    %c0_i32_1 = arith.constant 0 : i32
    return %c0_i32, %c0_i32_0 : i32, i32
  }
  func.func @transform_5(%arg0: i32) -> (i32, i32) {
    %c0_i32 = arith.constant 0 : i32
    %c0_i32_0 = arith.constant 0 : i32
    %c0_i32_1 = arith.constant 0 : i32
    return %c0_i32, %c0_i32_0 : i32, i32
  }
  func.func @transform_6(%arg0: i32) -> (i32, i32) {
    %c0_i32 = arith.constant 0 : i32
    %c0_i32_0 = arith.constant 0 : i32
    %c0_i32_1 = arith.constant 0 : i32
    return %c0_i32, %c0_i32_0 : i32, i32
  }
  func.func @transform_7(%arg0: i32) -> (i32, i32) {
    %c0_i32 = arith.constant 0 : i32
    %c0_i32_0 = arith.constant 0 : i32
    return %c0_i32, %arg0 : i32, i32
  }
}

</mosaic_0001>

<llo_original>
// kernel: tpu_custom_call.1
$region0: #{tpu_custom_call.1}
  #allocation0 [shape = 'u32[]', space=smem, size = 0x4, offset = 0x4, fixed_abs, tag = 'smem constant byte address 0x4 - core index']
  #allocation1 [shape = 'u32[144,128]{1,0:T(1,128)}', space=vmem, size = 0x12000, scoped, tag = 'internal scratch']
  #allocation2 [shape = 'f32[1,1]{1,0:T(1,128)S(1)}', space=vmem, size = 0x200, scoped, tag = 'scoped memory for tpu_custom_call.1']
  %s0 = inlined_call_operand.vmem [shape: f32[2,128], index: 0, kind: input, shape index: {}]
  %s1 = inlined_call_operand.vmem [shape: f32[16,2], index: 1, kind: input, shape index: {}]
  %s2 = inlined_call_operand.vmem [shape: f32[16,1], index: 2, kind: input, shape index: {}]
  %s3 = inlined_call_operand.vmem [shape: f32[16,16], index: 3, kind: input, shape index: {}]
  %s4 = inlined_call_operand.vmem [shape: f32[16,1], index: 4, kind: input, shape index: {}]
  %s5 = inlined_call_operand.vmem [shape: f32[16,1], index: 5, kind: input, shape index: {}]
  %s6 = inlined_call_operand.<no memory space> [shape: f32[1,1], index: 6, kind: input, shape index: {}]
  %s7 = inlined_call_operand.hbm [shape: f32[1,128], index: 7, kind: output, shape index: {}]
  %s8 = sld [smem:[#allocation0]]
  $region38: #{tpu_custom_call.1} parent=0
    _
  %s10 = ssub.s32 1, %s8
  %s11 = scalar_select 0, %s10, %s8
  %v12 = vstv %s6
  %13 = vst [vmem:[#allocation2] sm:$0x1] %v12
  $region1: #{tpu_custom_call.1} parent=0
    #allocation3 [shape = 'u8[512]{0}', space=vmem, size = 0x400, scoped, tag = 'output window, operand 0, single buffered']
    #allocation4 [shape = 's32[1]{0}', space=sflag, size = 0x4, scoped, tag = 'scoped memory for tpu_custom_call.1']
    %14 = vsyncpa [#allocation4], 0
    // Predicated region
    $region2: #{tpu_custom_call.1} parent=1 // pred_check
      _
    $region3: #{tpu_custom_call.1} parent=1 // pred_check_branch
      %16 = sbr.rel (0) target = $region5
    $region4: #{tpu_custom_call.1} parent=1 // pred_region
      _
    $region5: #{tpu_custom_call.1} parent=1 // pred_fallthru
      _
    // Predicated region
    $region6: #{tpu_custom_call.1} parent=1 // pred_check
      _
    $region7: #{tpu_custom_call.1} parent=1 // pred_check_branch
      %18 = sbr.rel (0) target = $region9
    $region8: #{tpu_custom_call.1} parent=1 // pred_region
      _
    $region9: #{tpu_custom_call.1} parent=1 // pred_fallthru
      _
    // Predicated region
    $region10: #{tpu_custom_call.1} parent=1 // pred_check
      _
    $region11: #{tpu_custom_call.1} parent=1 // pred_check_branch
      %20 = sbr.rel (0) target = $region13
    $region12: #{tpu_custom_call.1} parent=1 // pred_region
      _
    $region13: #{tpu_custom_call.1} parent=1 // pred_fallthru
      _
    // Predicated region
    $region14: #{tpu_custom_call.1} parent=1 // pred_check
      _
    $region15: #{tpu_custom_call.1} parent=1 // pred_check_branch
      %22 = sbr.rel (0) target = $region17
    $region16: #{tpu_custom_call.1} parent=1 // pred_region
      _
    $region17: #{tpu_custom_call.1} parent=1 // pred_fallthru
      _
    // Predicated region
    $region18: #{tpu_custom_call.1} parent=1 // pred_check
      _
    $region19: #{tpu_custom_call.1} parent=1 // pred_check_branch
      %24 = sbr.rel (0) target = $region21
    $region20: #{tpu_custom_call.1} parent=1 // pred_region
      _
    $region21: #{tpu_custom_call.1} parent=1 // pred_fallthru
      _
    // Predicated region
    $region22: #{tpu_custom_call.1} parent=1 // pred_check
      _
    $region23: #{tpu_custom_call.1} parent=1 // pred_check_branch
      %26 = sbr.rel (0) target = $region25
    $region24: #{tpu_custom_call.1} parent=1 // pred_region
      _
    $region25: #{tpu_custom_call.1} parent=1 // pred_fallthru
      _
    // Predicated region
    $region26: #{tpu_custom_call.1} parent=1 // pred_check
      _
    $region27: #{tpu_custom_call.1} parent=1 // pred_check_branch
      %28 = sbr.rel (0) target = $region29
    $region28: #{tpu_custom_call.1} parent=1 // pred_region
      _
    $region29: #{tpu_custom_call.1} parent=1 // pred_fallthru
      _
    %v29 = vld [vmem:[%s1] sm:$0xff]
    %v30 = vld [vmem:[%s1 + $0x8] sm:$0xff]
    %v31 = vld [vmem:[%s2] sm:$0xff]
    %v32 = vld [vmem:[%s2 + $0x8] sm:$0xff]
    %v33 = vld [vmem:[%s3] sm:$0xff]
    %v34 = vld [vmem:[%s3 + $0x8] sm:$0xff]
    %v35 = vld [vmem:[%s4] sm:$0xff]
    %v36 = vld [vmem:[%s4 + $0x8] sm:$0xff]
    %v37 = vld [vmem:[%s5] sm:$0xff]
    %v38 = vld [vmem:[%s5 + $0x8] sm:$0xff]
    %v39 = vld [vmem:[#allocation2] sm:$0x1]
    %v40 = vld [vmem:[%s0] sm:$0x3]
    %42 = vset.pattern.permute.xlu0 0
    %43 = vperm.xlu0 %42, %v29
    %v44 = vpop.permute.xlu0 %43
    %47 = vset.pattern.permute.xlu0 0
    %48 = vperm.xlu0 %47, %v30
    %v49 = vpop.permute.xlu0 %48
    %v51 = vlaneseq
    %v52 = vshrl.u32 %v51, 7
    %v53 = vsub.s32 0, %v52
    %v54 = vrot.slane %v40, %v53
    %v55 = vmul.f32 %v44, %v54
    %v56 = vmul.f32 %v49, %v54
    %57 = vset.pattern.permute.xlu0 1
    %58 = vperm.xlu0 %57, %v29
    %v59 = vpop.permute.xlu0 %58
    %61 = vset.pattern.permute.xlu0 1
    %62 = vperm.xlu0 %61, %v30
    %v63 = vpop.permute.xlu0 %62
    %v65 = vlaneseq
    %v66 = vshrl.u32 %v65, 7
    %v67 = vsub.s32 1, %v66
    %v68 = vrot.slane %v40, %v67
    %v69 = vmul.f32 %v59, %v68
    %v70 = vmul.f32 %v63, %v68
    %v71 = vadd.f32 %v55, %v69
    %v72 = vadd.f32 %v56, %v70
    %74 = vset.pattern.permute.xlu0 0
    %75 = vperm.xlu0 %74, %v31
    %v76 = vpop.permute.xlu0 %75
    %79 = vset.pattern.permute.xlu0 0
    %80 = vperm.xlu0 %79, %v32
    %v81 = vpop.permute.xlu0 %80
    %v83 = vadd.f32 %v71, %v76
    %v84 = vadd.f32 %v72, %v81
    %vm85 = vcmp.gt.f32.partialorder %v83, 0.0
    %vm86 = vcmp.gt.f32.partialorder %v84, 0.0
    %v87 = vmin.f32 %v83, 0.0
    %v88 = vmin.f32 %v84, 0.0
    %v89 = vmul.f32 %v87, 1.442695
    %v90 = vpow.pop %v89
    %v91 = vmul.f32 %v88, 1.442695
    %v92 = vpow.pop %v91
    %v93 = vsub.f32 %v90, 1.0
    %v94 = vsub.f32 %v92, 1.0
    %v95 = vsel %vm85, %v83, %v93
    %v96 = vsel %vm86, %v84, %v94
    %98 = vset.pattern.permute.xlu0 0
    %99 = vperm.xlu0 %98, %v35
    %v100 = vpop.permute.xlu0 %99
    %103 = vset.pattern.permute.xlu0 0
    %104 = vperm.xlu0 %103, %v36
    %v105 = vpop.permute.xlu0 %104
    %vm107 = vcmask 130048
    %v109 = vsel %vm107, %v33, 0
    %v112 = vsel %vm107, %v34, 0
    %114 = vmatprep.subr.mxu0 0.0
    %115 = vmatpush1.msra.mxu0 0.0
    %116 = vmatprep.subr.mxu0 0.0
    %117 = vmatpush1.msra.mxu0 0.0
    %118 = vmatprep.subr.mxu0 0.0
    %119 = vmatpush1.msra.mxu0 0.0
    %120 = vmatprep.subr.mxu0 0.0
    %121 = vmatpush1.msra.mxu0 0.0
    %122 = vmatprep.subr.mxu0 0.0
    %123 = vmatpush1.msra.mxu0 0.0
    %124 = vmatprep.subr.mxu0 0.0
    %125 = vmatpush1.msra.mxu0 0.0
    %126 = vmatprep.subr.mxu0 0.0
    %127 = vmatpush1.msra.mxu0 0.0
    %128 = vmatprep.subr.mxu0 0.0
    %129 = vmatpush1.msra.mxu0 0.0
    %130 = vmatprep.subr.mxu0 0.0
    %131 = vmatpush1.msra.mxu0 0.0
    %132 = vmatprep.subr.mxu0 0.0
    %133 = vmatpush1.msra.mxu0 0.0
    %134 = vmatprep.subr.mxu0 0.0
    %135 = vmatpush1.msra.mxu0 0.0
    %136 = vmatprep.subr.mxu0 0.0
    %137 = vmatpush1.msra.mxu0 0.0
    %138 = vmatprep.subr.mxu0 0.0
    %139 = vmatpush1.msra.mxu0 0.0
    %140 = vmatprep.subr.mxu0 0.0
    %141 = vmatpush1.msra.mxu0 0.0
    %142 = vmatprep.subr.mxu0 0.0
    %143 = vmatpush1.msra.mxu0 %v96
    %144 = vmatprep.subr.mxu0 0.0
    %145 = vmatpush1.msra.mxu0 %v95
    %146 = vmatprep.subr.mxu0 0.0
    %147 = vmatpush2.msra.mxu0 0.0
    %148 = vmatprep.subr.mxu0 0.0
    %149 = vmatpush2.msra.mxu0 0.0
    %150 = vmatprep.subr.mxu0 0.0
    %151 = vmatpush2.msra.mxu0 0.0
    %152 = vmatprep.subr.mxu0 0.0
    %153 = vmatpush2.msra.mxu0 0.0
    %154 = vmatprep.subr.mxu0 0.0
    %155 = vmatpush2.msra.mxu0 0.0
    %156 = vmatprep.subr.mxu0 0.0
    %157 = vmatpush2.msra.mxu0 0.0
    %158 = vmatprep.subr.mxu0 0.0
    %159 = vmatpush2.msra.mxu0 0.0
    %160 = vmatprep.subr.mxu0 0.0
    %161 = vmatpush2.msra.mxu0 0.0
    %162 = vmatprep.subr.mxu0 0.0
    %163 = vmatpush2.msra.mxu0 0.0
    %164 = vmatprep.subr.mxu0 0.0
    %165 = vmatpush2.msra.mxu0 0.0
    %166 = vmatprep.subr.mxu0 0.0
    %167 = vmatpush2.msra.mxu0 0.0
    %168 = vmatprep.subr.mxu0 0.0
    %169 = vmatpush2.msra.mxu0 0.0
    %170 = vmatprep.subr.mxu0 0.0
    %171 = vmatpush2.msra.mxu0 0.0
    %172 = vmatprep.subr.mxu0 0.0
    %173 = vmatpush2.msra.mxu0 0.0
    %174 = vmatprep.subr.mxu0 0.0
    %175 = vmatpush2.msra.mxu0 0.0
    %176 = vmatprep.subr.mxu0 0.0
    %177 = vmatpush2.msra.mxu0 0.0
    %178 = vmatprep.mubr.f32.mxu0 0.0
    %179 = vmatmul.mubr.f32.gmra.mxu0 %v109
    %v180 = vpop.f32.mrf.mxu0
    %v181 = vadd.f32 %v100, %v180
    %v182 = vpop.f32.mrf.mxu0
    %183 = vmatprep.mubr.f32.mxu0 0.0
    %184 = vmatmul.mubr.f32.gmra.mxu0 %v112
    %v185 = vpop.f32.mrf.mxu0
    %v186 = vadd.f32 %v105, %v185
    %v187 = vpop.f32.mrf.mxu0
    %188 = vdwg.mxu0
    %vm189 = vcmp.gt.f32.partialorder %v181, 0.0
    %vm190 = vcmp.gt.f32.partialorder %v186, 0.0
    %v191 = vmin.f32 %v181, 0.0
    %v192 = vmin.f32 %v186, 0.0
    %v193 = vmul.f32 %v191, 1.442695
    %v194 = vpow.pop %v193
    %v195 = vmul.f32 %v192, 1.442695
    %v196 = vpow.pop %v195
    %v197 = vsub.f32 %v194, 1.0
    %v198 = vsub.f32 %v196, 1.0
    %v199 = vsel %vm189, %v181, %v197
    %v200 = vsel %vm190, %v186, %v198
    %202 = vset.pattern.permute.xlu0 0
    %203 = vperm.xlu0 %202, %v37
    %v204 = vpop.permute.xlu0 %203
    %207 = vset.pattern.permute.xlu0 0
    %208 = vperm.xlu0 %207, %v38
    %v209 = vpop.permute.xlu0 %208
    %v211 = vmul.f32 %v204, %v199
    %v212 = vmul.f32 %v209, %v200
    %v213 = vadd.f32 %v211, %v212
    %v214 = vrot.slane %v213, 4
    %v215 = vadd.f32 %v213, %v214
    %v216 = vrot.slane %v215, 2
    %v217 = vadd.f32 %v215, %v216
    %v218 = vrot.slane %v217, 1
    %v219 = vadd.f32 %v217, %v218
    %221 = vset.pattern.permute.xlu0 0
    %222 = vperm.xlu0 %221, %v39
    %v223 = vpop.permute.xlu0 %222
    %v225 = vlaneseq
    %v226 = vshrl.u32 %v225, 7
    %v227 = vsub.s32 0, %v226
    %v228 = vrot.slane %v223, %v227
    %v229 = vadd.f32 %v219, %v228
    %v230 = vand.u32 2147483647, %v229
    %v231 = vsub.f32 0.0, %v230
    %v232 = vmul.f32 %v231, 1.442695
    %v233 = vpow.pop %v232
    %vm234 = vcmp.ge.f32.partialorder %v229, 0.0
    %v235 = vsel %vm234, 1.0, %v233
    %v236 = vadd.f32 %v233, 1.0
    %v237 = vrcp.pop %v236
    %v238 = vmul.f32 %v235, %v237
    %239 = vst [vmem:[#allocation3] sm:$0x1] %v238
    // Predicated region
    $region30: #{tpu_custom_call.1} parent=1 // pred_check
      _
    $region31: #{tpu_custom_call.1} parent=1 // pred_check_branch
      %241 = sbr.rel (0) target = $region33
    $region32: #{tpu_custom_call.1} parent=1 // pred_region
      %s243 = ssub.s32 16, 16
      %244 = vsyncadd [#allocation4], %s243
      %s246 = sshll.u32 [#allocation3], 4
      %s247 = int_to_ptr.vmem [resolvable:$true] %s246
      %249 = dma.vmem_to_hbm [thread:$0]  %s247, 16, %s7, [#allocation4]
    $region33: #{tpu_custom_call.1} parent=1 // pred_fallthru
      _
    // Predicated region
    $region34: #{tpu_custom_call.1} parent=1 // pred_check
      _
    $region35: #{tpu_custom_call.1} parent=1 // pred_check_branch
      %251 = sbr.rel (0) target = $region37
    $region36: #{tpu_custom_call.1} parent=1 // pred_region
      %252 = dma.done [#allocation4], 16
    $region37: #{tpu_custom_call.1} parent=1 // pred_fallthru
      _
    %253 = vsyncpa [#allocation4], 1

</llo_original>
